<compile_context>
chip_gen: v7x
topology: tpu7x:2x2x1
jax: 0.10.0
libtpu: 0.0.40
codegen_flags: <defaults>
</compile_context>

<pallas_src>
import math
import functools

import jax
import jax.numpy as jnp
from jax.experimental import pallas as pl
from jax.experimental.pallas import tpu as pltpu


def _sin_pos_emb_kernel(t_ref, freqs_ref, phase_ref, o_ref):
    # t_ref:     (TILE_B, 1)   int32/float in VMEM (cast here, not in the wrapper)
    # freqs_ref: (1, D)        f32 resident constant
    # phase_ref: (1, D)        f32 resident constant (0 for sin half, pi/2 for cos half)
    # o_ref:     (TILE_B, D)   f32
    t = t_ref[...].astype(jnp.float32)
    # Single full-width (lane-dense, unmasked) store: cos(x) == sin(x + pi/2).
    o_ref[...] = jnp.sin(t * freqs_ref[...] + phase_ref[...])


_TARGET_TILE_BYTES = 4 << 20   # ~4 MiB output tile: amortizes per-step overhead
_MAX_TILE_ROWS = 8192


def _choose_tile_b(B: int, embedding_dim: int) -> int:
    bytes_per_row = embedding_dim * 4
    tb = max(8, min(_MAX_TILE_ROWS, _TARGET_TILE_BYTES // bytes_per_row))
    tb = (tb // 8) * 8
    if B <= tb:
        # Fits in one block.  If there's enough work, split into two even tiles so
        # the "parallel" grid axis can shard across v7x's two TensorCores.
        if B >= 1024:
            return (((B + 1) // 2) + 7) // 8 * 8
        return B
    return tb


def sin_pos_emb(t: jax.Array, embedding_dim: int, *, tile_b: int | None = None) -> jax.Array:
    assert embedding_dim % 2 == 0, "Given embedding dimension is not an even number."
    half_dim = embedding_dim // 2
    assert half_dim > 1, "embedding_dim == 2 divides by zero (same as the PyTorch reference)."

    B = t.shape[0]
    t2 = t.reshape(B, 1)   # keep original dtype; cast happens inside the kernel

    # Frequency table built once (shared formula with the reference) and duplicated
    # across both halves; phase carries the pi/2 shift that turns sin into cos.
    scale = math.log(10000.0) / (half_dim - 1)
    freqs = jnp.exp(jnp.arange(half_dim, dtype=jnp.float32) * jnp.float32(-scale))
    freqs_cat = jnp.concatenate([freqs, freqs]).reshape(1, embedding_dim)
    phase = jnp.concatenate(
        [jnp.zeros((half_dim,), jnp.float32),
         jnp.full((half_dim,), jnp.float32(math.pi / 2.0))]
    ).reshape(1, embedding_dim)

    if tile_b is not None:
        tb = min(B, tile_b)
        if tb < B:
            tb = max(8, (tb // 8) * 8)   # sublane rule when the block doesn't cover B
    else:
        tb = _choose_tile_b(B, embedding_dim)

    grid = (pl.cdiv(B, tb),)

    cost = pl.CostEstimate(
        flops=2 * B * embedding_dim,                 # mul + phase add
        transcendentals=B * embedding_dim,           # one sin per output element
        bytes_accessed=B * embedding_dim * 4 + B * 4 + 2 * embedding_dim * 4,
    )

    # TODO(synk): for tiny B * embedding_dim (e.g. the 8x32 test below) pallas_call
    # fixed overhead still dominates and the fused-XLA reference is faster; the
    # kernel targets the large-B regime.
    return pl.pallas_call(
        _sin_pos_emb_kernel,
        out_shape=jax.ShapeDtypeStruct((B, embedding_dim), jnp.float32),
        grid=grid,
        in_specs=[
            pl.BlockSpec((tb, 1), lambda i: (i, 0)),
            pl.BlockSpec((1, embedding_dim), lambda i: (0, 0)),
            pl.BlockSpec((1, embedding_dim), lambda i: (0, 0)),
        ],
        out_specs=pl.BlockSpec((tb, embedding_dim), lambda i: (i, 0)),
        compiler_params=pltpu.CompilerParams(dimension_semantics=("parallel",)),
        cost_estimate=cost,
    )(t2, freqs_cat, phase)


def sin_pos_emb_ref(t: jax.Array, embedding_dim: int) -> jax.Array:
    """Pure-JAX reference mirroring the PyTorch forward."""
    half_dim = embedding_dim // 2
    emb = math.log(10000.0) / (half_dim - 1)
    emb = jnp.exp(jnp.arange(half_dim, dtype=jnp.float32) * -emb)
    emb = t.astype(jnp.float32)[:, None] * emb[None, :]
    return jnp.concatenate([jnp.sin(emb), jnp.cos(emb)], axis=1)


def _check(t, embedding_dim, **kw):
    out = jax.block_until_ready(sin_pos_emb(t, embedding_dim, **kw))
    ref = sin_pos_emb_ref(t, embedding_dim)
    assert out.shape == (t.shape[0], embedding_dim), out.shape
    assert out.dtype == jnp.float32
    err = float(jnp.abs(out - ref).max())
    # Tolerance: arguments reach ~1e3 rad; the fused sin(x + pi/2) adds at most a
    # half-ulp (~3e-5 at 1024 rad) of argument rounding on top of the Mosaic-vs-XLA
    # sin/cos implementation delta.  2e-4 sits well above that and well below any
    # real error.
    assert err < 2e-4, err
    return err


if __name__ == "__main__":
    key = jax.random.PRNGKey(0)

    # --- primary test: small shape, single full block -------------------------
    t_small = jax.random.randint(key, (8,), 0, 1000).astype(jnp.int32)
    _check(t_small, 32)

    # --- multi-tile grid path (even 2-tile split via _choose_tile_b) ----------
    t_big = jax.random.randint(jax.random.PRNGKey(1), (1024,), 0, 1000).astype(jnp.int32)
    _check(t_big, 128)

    # --- ragged path: B not a multiple of the tile (partial last block) -------
    t_ragged = jax.random.randint(jax.random.PRNGKey(2), (1000,), 0, 1000).astype(jnp.int32)
    _check(t_ragged, 128, tile_b=512)

    print("KERNEL_OK")
</pallas_src>

<mosaic_0001>
module attributes {stable_mosaic.version = 11 : i64} {
  func.func @_sin_pos_emb_kernel(%arg0: i32, %arg1: memref<8x1xi32, #tpu.memory_space<vmem>>, %arg2: memref<1x32xf32, #tpu.memory_space<vmem>>, %arg3: memref<1x32xf32, #tpu.memory_space<vmem>>, %arg4: memref<8x32xf32, #tpu.memory_space<vmem>>) attributes {dimension_semantics = [#tpu.dimension_semantics<parallel>], iteration_bounds = array<i64: 1>, scalar_prefetch = 0 : i64, scratch_operands = 0 : i64, tpu.core_type = #tpu.core_type<tc>, window_params = [{transform_indices = @transform_0, window_bounds = array<i64: 8, 1>}, {pipeline_mode = #tpu.pipeline_mode<synchronous>, transform_indices = @transform_1, window_bounds = array<i64: 1, 32>}, {pipeline_mode = #tpu.pipeline_mode<synchronous>, transform_indices = @transform_2, window_bounds = array<i64: 1, 32>}, {transform_indices = @transform_3, window_bounds = array<i64: 8, 32>}]} {
    %c0 = arith.constant 0 : index
    %c0_0 = arith.constant 0 : index
    %0 = vector.load %arg1[%c0, %c0_0] : memref<8x1xi32, #tpu.memory_space<vmem>>, vector<8x1xi32>
    %1 = arith.sitofp %0 : vector<8x1xi32> to vector<8x1xf32>
    %c0_1 = arith.constant 0 : index
    %c0_2 = arith.constant 0 : index
    %2 = vector.load %arg2[%c0_1, %c0_2] : memref<1x32xf32, #tpu.memory_space<vmem>>, vector<1x32xf32>
    %3 = vector.broadcast %1 : vector<8x1xf32> to vector<8x32xf32>
    %4 = vector.broadcast %2 : vector<1x32xf32> to vector<8x32xf32>
    %5 = arith.mulf %3, %4 : vector<8x32xf32>
    %c0_3 = arith.constant 0 : index
    %c0_4 = arith.constant 0 : index
    %6 = vector.load %arg3[%c0_3, %c0_4] : memref<1x32xf32, #tpu.memory_space<vmem>>, vector<1x32xf32>
    %7 = vector.broadcast %6 : vector<1x32xf32> to vector<8x32xf32>
    %8 = arith.addf %5, %7 : vector<8x32xf32>
    %9 = math.sin %8 : vector<8x32xf32>
    %c0_5 = arith.constant 0 : index
    %c0_6 = arith.constant 0 : index
    %10 = vector.load %arg4[%c0_5, %c0_6] : memref<8x32xf32, #tpu.memory_space<vmem>>, vector<8x32xf32>
    tpu.vector_store %arg4[%c0_5, %c0_6], %9 {strides = array<i32>} : memref<8x32xf32, #tpu.memory_space<vmem>>, vector<8x32xf32>,
    return
  }
  func.func @transform_0(%arg0: i32) -> (i32, i32) {
    %c0_i32 = arith.constant 0 : i32
    %c0_i32_0 = arith.constant 0 : i32
    return %arg0, %c0_i32 : i32, i32
  }
  func.func @transform_1(%arg0: i32) -> (i32, i32) {
    %c0_i32 = arith.constant 0 : i32
    %c0_i32_0 = arith.constant 0 : i32
    %c0_i32_1 = arith.constant 0 : i32
    return %c0_i32, %c0_i32_0 : i32, i32
  }
  func.func @transform_2(%arg0: i32) -> (i32, i32) {
    %c0_i32 = arith.constant 0 : i32
    %c0_i32_0 = arith.constant 0 : i32
    %c0_i32_1 = arith.constant 0 : i32
    return %c0_i32, %c0_i32_0 : i32, i32
  }
  func.func @transform_3(%arg0: i32) -> (i32, i32) {
    %c0_i32 = arith.constant 0 : i32
    %c0_i32_0 = arith.constant 0 : i32
    return %arg0, %c0_i32 : i32, i32
  }
}

</mosaic_0001>

<llo_original>
// kernel: tpu_custom_call.1
$region0: #{tpu_custom_call.1}
  #allocation0 [shape = 'u32[]', space=smem, size = 0x4, offset = 0x4, fixed_abs, tag = 'smem constant byte address 0x4 - core index']
  #allocation1 [shape = 'u32[144,128]{1,0:T(1,128)}', space=vmem, size = 0x12000, scoped, tag = 'internal scratch']
  %s0 = inlined_call_operand.vmem [shape: s32[8,1], index: 0, kind: input, shape index: {}]
  %s1 = inlined_call_operand.vmem [shape: f32[1,32], index: 1, kind: input, shape index: {}]
  %s2 = inlined_call_operand.vmem [shape: f32[1,32], index: 2, kind: input, shape index: {}]
  %s3 = inlined_call_operand.hbm [shape: f32[8,32], index: 3, kind: output, shape index: {}]
  %s4 = sld [smem:[#allocation0]]
  $region22: #{tpu_custom_call.1} parent=0
    _
  %s6 = ssub.s32 1, %s4
  %s7 = scalar_select 0, %s6, %s4
  $region1: #{tpu_custom_call.1} parent=0
    #allocation2 [shape = 'u8[4096]{0}', space=vmem, size = 0x1000, scoped, tag = 'output window, operand 0, single buffered']
    #allocation3 [shape = 's32[1]{0}', space=sflag, size = 0x4, scoped, tag = 'scoped memory for tpu_custom_call.1']
    %8 = vsyncpa [#allocation3], 0
    // Predicated region
    $region2: #{tpu_custom_call.1} parent=1 // pred_check
      _
    $region3: #{tpu_custom_call.1} parent=1 // pred_check_branch
      %10 = sbr.rel (0) target = $region5
    $region4: #{tpu_custom_call.1} parent=1 // pred_region
      _
    $region5: #{tpu_custom_call.1} parent=1 // pred_fallthru
      _
    // Predicated region
    $region6: #{tpu_custom_call.1} parent=1 // pred_check
      _
    $region7: #{tpu_custom_call.1} parent=1 // pred_check_branch
      %12 = sbr.rel (0) target = $region9
    $region8: #{tpu_custom_call.1} parent=1 // pred_region
      _
    $region9: #{tpu_custom_call.1} parent=1 // pred_fallthru
      _
    // Predicated region
    $region10: #{tpu_custom_call.1} parent=1 // pred_check
      _
    $region11: #{tpu_custom_call.1} parent=1 // pred_check_branch
      %14 = sbr.rel (0) target = $region13
    $region12: #{tpu_custom_call.1} parent=1 // pred_region
      _
    $region13: #{tpu_custom_call.1} parent=1 // pred_fallthru
      _
    %v15 = vld [vmem:[%s0] sm:$0xff]
    %v16 = vcvt.s32.f32 %v15
    %v17 = vld [vmem:[%s1] sm:$0x1]
    %19 = vset.pattern.permute.xlu0 0
    %20 = vperm.xlu0 %19, %v16
    %v21 = vpop.permute.xlu0 %20
    %v24 = vlaneseq
    %v25 = vshrl.u32 %v24, 7
    %v26 = vsub.s32 0, %v25
    %v27 = vrot.slane %v17, %v26
    %v29 = vmul.f32 %v21, %v27
    %v30 = vld [vmem:[%s2] sm:$0x1]
    %v32 = vlaneseq
    %v33 = vshrl.u32 %v32, 7
    %v34 = vsub.s32 0, %v33
    %v35 = vrot.slane %v30, %v34
    %v37 = vadd.f32 %v29, %v35
    %v38 = vand.u32 2147483647, %v37
    %vm39 = vcmp.le.f32.partialorder %v38, 0.7853982
    %vm40 = vcmp.lt.s32.totalorder %v37, 0
    %v41 = vand.u32 %v37, 2139095040
    %v42 = vshrl.u32 %v41, 23
    %v43 = vsub.s32 %v42, 127
    %v44 = vand.u32 2147483647, %v37
    %v45 = vand.u32 %v44, 8388607
    %v46 = vor.u32 %v45, 8388608
    %v47 = vsub.s32 0, %v46
    %v48 = vadd.s32 %v43, 1
    %vm49 = vcmp.gt.s32.totalorder %v48, 0
    %v50 = vsel %vm49, %v48, 0
    %v51 = vshrl.u32 %v50, 5
    %v52 = vand.u32 %v50, 31
    %v53 = vsub.s32 32, %v52
    %v54 = vshrl.u32 683565275, %v53
    %v55 = vshll.u32 683565275, %v52
    %v56 = vshrl.u32 2475754826, %v53
    %v57 = vor.u32 %v55, %v56
    %v58 = vshll.u32 2475754826, %v52
    %v59 = vshrl.u32 2131351028, %v53
    %v60 = vor.u32 %v58, %v59
    %v61 = vshll.u32 2131351028, %v52
    %v62 = vshrl.u32 2102212464, %v53
    %v63 = vor.u32 %v61, %v62
    %v64 = vshll.u32 2102212464, %v52
    %v65 = vshrl.u32 920167782, %v53
    %v66 = vor.u32 %v64, %v65
    %v67 = vshll.u32 920167782, %v52
    %v68 = vshrl.u32 1326507024, %v53
    %v69 = vor.u32 %v67, %v68
    %vm70 = vcmp.lt.s32.totalorder %v51, 1
    %vm71 = vcmp.lt.s32.totalorder %v51, 2
    %vm72 = vcmp.lt.s32.totalorder %v51, 3
    %vm73 = vcmp.lt.s32.totalorder %v51, 4
    %v74 = vsel %vm70, %v54, %v57
    %v75 = vsel %vm73, %v63, 2102212464
    %v76 = vsel %vm72, %v60, %v75
    %v77 = vsel %vm71, %v74, %v76
    %v78 = vsel %vm70, %v57, %v60
    %v79 = vsel %vm73, %v66, 920167782
    %v80 = vsel %vm72, %v63, %v79
    %v81 = vsel %vm71, %v78, %v80
    %v82 = vsel %vm70, %v60, %v63
    %v83 = vsel %vm73, %v69, 1326507024
    %v84 = vsel %vm72, %v66, %v83
    %v85 = vsel %vm71, %v82, %v84
    %v86 = vshll.u32 %v46, 8
    %v87 = vmul.u32.u64.compose %v86, %v85
    %v88 = vextract.low.u32 %v87
    %v89 = vextract.high.u32 %v87
    %v90 = vmul.u32.u64.compose %v86, %v81
    %v91 = vextract.low.u32 %v90
    %v92 = vextract.high.u32 %v90
    %v93 = vmul.u32 %v86, %v77
    %v94 = vadd.s32 %v89, %v91
    %vm95 = vc.u32 %v89, %v91
    %v96 = vadd.s32 %v92, 1
    %v97 = vsel %vm95, %v96, %v92
    %v98 = vadd.s32 %v93, %v97
    %v99 = vadd.s32 %v98, 536870912
    %v100 = vshrl.u32 %v99, 30
    %v101 = vshll.u32 %v100, 30
    %v102 = vsub.s32 %v98, %v101
    %vm103 = vcmp.lt.s32.totalorder %v102, 0
    %v104 = vsub.s32 0, %v102
    %v105 = vsel %vm103, %v104, %v102
    %v106 = vclz %v105
    %v107 = vsub.s32 %v106, 2
    %vm108 = vcmp.gt.s32.totalorder 0, %v107
    %v109 = vsel %vm108, 0, %v107
    %v110 = vsub.s32 32, %v109
    %v111 = vshll.u32 %v102, %v109
    %v112 = vshrl.u32 %v94, %v110
    %v113 = vor.u32 %v111, %v112
    %v114 = vsub.s32 4294967266, %v109
    %v115 = vadd.s32 %v114, 127
    %v116 = vshll.u32 %v115, 23
    %v117 = vor.u32 4788187, %v116
    %v118 = vand.u32 2147483647, %v117
    %v120 = vcvt.s32.f32 %v113
    %v121 = vmul.f32 %v120, %v118
    %v122 = vxor.u32 %v121, 2147483648
    %v123 = vsel %vm40, %v122, %v121
    %v124 = vsub.s32 4, %v100
    %v125 = vsel %vm40, %v124, %v100
    %v126 = vsel %vm39, %v37, %v123
    %v127 = vsel %vm39, 0, %v125
    %v128 = vcosq.f32.pop %v126
    %v129 = vsinq.f32.pop %v126
    %vm130 = vweird.f32 %v37
    %v131 = vadd.s32 %v127, 3
    %v132 = vand.u32 %v131, 3
    %vm133 = vcmp.lt.s32.totalorder %v132, 2
    %vm134 = vcmp.eq.s32.totalorder %v132, 0
    %v135 = vxor.u32 %v129, 2147483648
    %v136 = vsel %vm134, %v128, %v135
    %vm137 = vcmp.eq.s32.totalorder %v132, 2
    %v138 = vxor.u32 %v128, 2147483648
    %v139 = vsel %vm137, %v138, %v129
    %v140 = vsel %vm133, %v136, %v139
    %v141 = vsel %vm130, nan, %v140
    %vm142 = vcmask 261120
    %143 = vst.msk [vmem:[#allocation2] sm:$0xff] %vm142, %v141
    // Predicated region
    $region14: #{tpu_custom_call.1} parent=1 // pred_check
      _
    $region15: #{tpu_custom_call.1} parent=1 // pred_check_branch
      %145 = sbr.rel (0) target = $region17
    $region16: #{tpu_custom_call.1} parent=1 // pred_region
      %s147 = ssub.s32 128, 128
      %148 = vsyncadd [#allocation3], %s147
      %s150 = sshll.u32 [#allocation2], 4
      %s151 = int_to_ptr.vmem [resolvable:$true] %s150
      %153 = dma.vmem_to_hbm [thread:$0]  %s151, 128, %s3, [#allocation3]
    $region17: #{tpu_custom_call.1} parent=1 // pred_fallthru
      _
    // Predicated region
    $region18: #{tpu_custom_call.1} parent=1 // pred_check
      _
    $region19: #{tpu_custom_call.1} parent=1 // pred_check_branch
      %155 = sbr.rel (0) target = $region21
    $region20: #{tpu_custom_call.1} parent=1 // pred_region
      %156 = dma.done [#allocation3], 128
    $region21: #{tpu_custom_call.1} parent=1 // pred_fallthru
      _
    %157 = vsyncpa [#allocation3], 1

</llo_original>
